<compile_context>
chip_gen: v7x
topology: tpu7x:2x2x1
jax: 0.10.0
libtpu: 0.0.40
codegen_flags: <defaults>
</compile_context>

<pallas_src>
import functools
import math

import jax
import jax.numpy as jnp
from jax import lax
from jax.experimental import pallas as pl
from jax.experimental.pallas import tpu as pltpu

_LANE_CANDIDATES = (1024, 512, 256, 128)   # prefer wide, lane-dense blocks
_TILE_TARGET_BYTES = 4 << 20               # ~4 MiB f32 per tile buffer
_FUSED_MAX_BYTES = 4 << 20                 # whole-array single-kernel path
_VMEM_CAP = 48 << 20                       # headroom under v7x's 64 MiB VMEM


def _choose_layout(n):
    """Pick (lane, rows, tile_rows, padded_n) for a flat length-n array."""
    for w in _LANE_CANDIDATES:
        if n % w == 0:
            lane, padded_n = w, n          # fast path: no padding copy at all
            break
    else:
        lane = 512
        padded_n = -(-n // lane) * lane
    rows = padded_n // lane
    # Multiple of 32 sublanes (legal for f32/bf16/int8 packing) unless the
    # full extent is used, which is always legal.  tr_max * lane * 4 == 4 MiB,
    # so any array that needs more than one tile misses the fused path and
    # always gets >= 2 grid steps (v7x megacore engaged).
    tr_max = max(32, (_TILE_TARGET_BYTES // (lane * 4)) // 32 * 32)
    tile_rows = rows if rows <= tr_max else tr_max
    return lane, rows, tile_rows, padded_n


def _aeg_map(d):
    """Pointwise OptAEGV1 map on normalized activations d (f32).

    Closed forms of the linspace interpolations:
      theta = 2*pi*sigmoid(d) - pi ,  ds = e*|tanh(d)|
      out   = d*exp(ds*sin(theta)) + ds*cos(theta)

    EUP budget: 5 pushes/element (exp(-|d|), one reciprocal, sin, cos,
    exp(dy)).  One exp serves both sigmoid and |tanh|; a single approximate
    reciprocal of (1+u)(1+u^2) recovers both denominators with VPU multiplies,
    plus one Newton step (VPU slack) for ~f32 accuracy.
    """
    u = jnp.exp(-jnp.abs(d))                  # in (0, 1]
    u2 = u * u
    a = jnp.float32(1.0) + u                  # sigmoid denominator
    b = jnp.float32(1.0) + u2                 # |tanh| denominator
    p = a * b
    rp = pl.reciprocal(p, approx=True)
    rp = rp * (jnp.float32(2.0) - p * rp)     # one Newton step
    sig = jnp.where(d >= 0, jnp.float32(1.0), u) * (rp * b)
    abs_tanh = (jnp.float32(1.0) - u2) * (rp * a)
    theta = sig * jnp.float32(2.0 * math.pi) - jnp.float32(math.pi)
    ds = abs_tanh * jnp.float32(math.e)
    dx = ds * jnp.cos(theta)
    dy = ds * jnp.sin(theta)
    return d * jnp.exp(dy) + dx


def _fused_kernel(iscale_ref, x_ref, o_ref, *, n, pad):
    """Whole-array VMEM-resident path: reduce + normalize + map in one call.

    iscale_ref: (1, 1) f32 SMEM
    x_ref/o_ref: (rows, lane) VMEM, full array (the last `pad` flat elements,
                 if any, are zeros from wrapper padding).
    """
    lane = x_ref.shape[-1]
    x = x_ref[...].astype(jnp.float32)

    # Two-pass mean / unbiased variance (better conditioned than the one-pass
    # sum-of-squares formula).  All "scalar" math is done on (1, lane) rows so
    # only vector ops are emitted; padded zeros are corrected exactly (each
    # contributes (0 - mean)^2 = mean^2 to the centered sum of squares).
    total = jnp.sum(x)
    mean_row = jnp.full((1, lane), total, jnp.float32) * jnp.float32(1.0 / n)
    xc = x - mean_row
    ssq_row = jnp.full((1, lane), jnp.sum(xc * xc), jnp.float32)
    if pad:
        ssq_row = ssq_row - jnp.float32(pad) * mean_row * mean_row
    inv_nm1 = jnp.float32(1.0 / max(n - 1, 1))    # n == 1 -> inf/nan (torch too)
    var_row = jnp.maximum(ssq_row * inv_nm1, jnp.float32(0.0))
    inv_row = iscale_ref[0, 0] * lax.rsqrt(var_row)

    d = xc * inv_row
    o_ref[...] = _aeg_map(d).astype(o_ref.dtype)


def _partials_kernel(x_ref, p_ref, *, rows, tile_rows):
    """Per-tile lane partials: p[0,:] = sum(x), p[1,:] = sum(x*x).

    Every grid step writes its own (2, lane) block, so the grid axis carries
    no state (fully parallel; v7x megacore can split it).  Lane partials also
    avoid a serial scalar accumulation chain and improve summation accuracy.
    """
    x = x_ref[...].astype(jnp.float32)
    if rows % tile_rows != 0:
        # Statically gated: only compiled when the last tile is ragged along
        # the sublane axis (rows past the array end hold undefined data).
        row = lax.broadcasted_iota(jnp.int32, x.shape, 0) + pl.program_id(0) * tile_rows
        x = jnp.where(row < rows, x, jnp.float32(0.0))
    p_ref[0:1, :] = jnp.sum(x, axis=0, keepdims=True)
    p_ref[1:2, :] = jnp.sum(x * x, axis=0, keepdims=True)


def _map_kernel(scal_ref, x_ref, o_ref):
    """Tiled elementwise map.  scal_ref (SMEM, (1,2)) = [mean, iscale/std]."""
    d = (x_ref[...].astype(jnp.float32) - scal_ref[0, 0]) * scal_ref[0, 1]
    o_ref[...] = _aeg_map(d).astype(o_ref.dtype)


@functools.partial(jax.jit, static_argnames=("points",))
def opt_aeg_v1(x, iscale, points=3779):
    """Pallas TPU implementation of OptAEGV1.forward.

    `points` only defines the interpolation tables, which collapse to closed
    form inside the kernels.  As in torch, std == 0 (constant input) or n == 1
    yields inf/nan.
    """
    del points
    orig_shape = x.shape
    orig_dtype = x.dtype
    n = int(x.size)

    # Keep floating inputs in their own HBM dtype (halves DMA bytes for bf16);
    # tiles are cast to f32 in VMEM and cast back on store.
    work_dtype = orig_dtype if jnp.issubdtype(orig_dtype, jnp.floating) else jnp.float32

    lane, rows, tile_rows, padded_n = _choose_layout(n)
    pad = padded_n - n
    flat = jnp.ravel(x).astype(work_dtype)
    if pad:
        # TODO(synk): rare unaligned-n path still pays one pad + one slice copy;
        # an in-kernel tail mask over a 1-D layout would remove it.
        flat = jnp.pad(flat, (0, pad))
    x2d = flat.reshape(rows, lane)
    isc = jnp.reshape(iscale, (1, 1)).astype(jnp.float32)

    smem = pl.BlockSpec(memory_space=pltpu.MemorySpace.SMEM)
    vmem = pl.BlockSpec(memory_space=pltpu.MemorySpace.VMEM)

    if padded_n * 4 <= _FUSED_MAX_BYTES:
        # ---- fused fast path: one kernel, whole array resident (2N HBM) ----
        out2d = pl.pallas_call(
            functools.partial(_fused_kernel, n=n, pad=pad),
            out_shape=jax.ShapeDtypeStruct((rows, lane), work_dtype),
            in_specs=[smem, vmem],
            out_specs=vmem,
            compiler_params=pltpu.CompilerParams(
                vmem_limit_bytes=int(min(40 << 20, _VMEM_CAP))),
        )(isc, x2d)
    else:
        num_tiles = -(-rows // tile_rows)          # >= 2 by construction
        tile_f32_bytes = tile_rows * lane * 4
        vmem_limit = int(min(_VMEM_CAP,
                             max(16 << 20, 8 * tile_f32_bytes + (4 << 20))))
        block = pl.BlockSpec((tile_rows, lane), lambda i: (i, 0))

        # ---- phase 1: per-tile lane partial sums, fully parallel grid ------
        partials = pl.pallas_call(
            functools.partial(_partials_kernel, rows=rows, tile_rows=tile_rows),
            out_shape=jax.ShapeDtypeStruct((num_tiles, 2, lane), jnp.float32),
            grid=(num_tiles,),
            in_specs=[block],
            out_specs=pl.BlockSpec((None, 2, lane), lambda i: (i, 0, 0)),
            compiler_params=pltpu.CompilerParams(
                dimension_semantics=("parallel",),
                vmem_limit_bytes=vmem_limit),
        )(x2d)

        # ---- tiny XLA glue: mean, inv = iscale * rsqrt(unbiased var) -------
        nf = jnp.float32(n)
        total = jnp.sum(partials[:, 0, :])
        total_sq = jnp.sum(partials[:, 1, :])
        mean = total / nf
        var = jnp.maximum((total_sq - total * mean) / (nf - jnp.float32(1.0)),
                          jnp.float32(0.0))
        inv = jnp.reshape(iscale, ()).astype(jnp.float32) * lax.rsqrt(var)
        scalars = jnp.stack([mean, inv]).reshape(1, 2)

        # ---- phase 2: elementwise map ("parallel" -> v7x megacore split) ---
        out2d = pl.pallas_call(
            _map_kernel,
            out_shape=jax.ShapeDtypeStruct((rows, lane), work_dtype),
            grid=(num_tiles,),
            in_specs=[smem, block],
            out_specs=block,
            compiler_params=pltpu.CompilerParams(
                dimension_semantics=("parallel",),
                vmem_limit_bytes=vmem_limit),
        )(scalars, x2d)

    out = out2d.reshape(-1)
    if pad:
        out = out[:n]
    return out.reshape(orig_shape).astype(orig_dtype)


def _reference(x, iscale):
    """Plain-JAX reference of the same forward (closed-form interpolation)."""
    xf = x.astype(jnp.float32)
    mean = jnp.mean(xf)
    std = jnp.sqrt(jnp.sum((xf - mean) ** 2) / (xf.size - 1))
    d = (xf - mean) / std * jnp.reshape(iscale, ()).astype(jnp.float32)
    theta = jax.nn.sigmoid(d) * (2.0 * math.pi) - math.pi
    ds = jnp.abs(jnp.tanh(d)) * math.e
    return d * jnp.exp(ds * jnp.sin(theta)) + ds * jnp.cos(theta)


if __name__ == "__main__":
    key = jax.random.PRNGKey(0)
    k_x, k_s, k_y = jax.random.split(key, 3)

    # NCHW input like the PyTorch module, plus its single (1,1,1,1) parameter.
    iscale = jax.random.normal(k_s, (1, 1, 1, 1), dtype=jnp.float32)

    # 1) Module-scale input -> fused single-kernel VMEM-resident path.
    x_small = jax.random.normal(k_x, (2, 4, 16, 16), dtype=jnp.float32)
    out_small = jax.block_until_ready(opt_aeg_v1(x_small, iscale))
    assert out_small.shape == x_small.shape, (out_small.shape, x_small.shape)
    assert out_small.dtype == x_small.dtype, out_small.dtype
    assert bool(jnp.all(jnp.isfinite(out_small)))
    err = float(jnp.max(jnp.abs(out_small - _reference(x_small, iscale))))
    assert err < 2e-2, ("fused path", err)

    # 2) Larger input -> tiled two-phase path (4 MiB blocks, ragged last tile).
    x_big = jax.random.normal(k_y, (13, 5, 96, 192), dtype=jnp.float32)
    out_big = jax.block_until_ready(opt_aeg_v1(x_big, iscale))
    assert out_big.shape == x_big.shape and out_big.dtype == x_big.dtype
    err = float(jnp.max(jnp.abs(out_big - _reference(x_big, iscale))))
    assert err < 2e-2, ("tiled path", err)

    # 3) bf16 input stays bf16 in HBM; kernels cast per-tile in VMEM.
    x_bf = x_small.astype(jnp.bfloat16)
    out_bf = jax.block_until_ready(opt_aeg_v1(x_bf, iscale))
    assert out_bf.shape == x_bf.shape and out_bf.dtype == jnp.bfloat16
    ref_bf = _reference(x_bf, iscale)
    rel = float(jnp.max(jnp.abs(out_bf.astype(jnp.float32) - ref_bf)
                        / (1.0 + jnp.abs(ref_bf))))
    assert rel < 2e-2, ("bf16 fused path", rel)

    print("KERNEL_OK")
</pallas_src>

<mosaic_0001>
module attributes {stable_mosaic.version = 11 : i64} {
  func.func @_fused_kernel(%arg0: memref<1x1xf32, #tpu.memory_space<smem>>, %arg1: memref<2x1024xf32, #tpu.memory_space<vmem>>, %arg2: memref<2x1024xf32, #tpu.memory_space<vmem>>) attributes {dimension_semantics = [], scalar_prefetch = 0 : i64, scratch_operands = 0 : i64, tpu.core_type = #tpu.core_type<tc>} {
    %c0 = arith.constant 0 : index
    %c0_0 = arith.constant 0 : index
    %0 = vector.load %arg1[%c0, %c0_0] : memref<2x1024xf32, #tpu.memory_space<vmem>>, vector<2x1024xf32>
    %1 = vector.shape_cast %0 : vector<2x1024xf32> to vector<1x2x1024xf32>
    %cst = arith.constant dense<0.000000e+00> : vector<1xf32>
    %2 = vector.multi_reduction <add>, %1, %cst [1, 2] : vector<1x2x1024xf32> to vector<1xf32>
    %3 = vector.shape_cast %2 : vector<1xf32> to vector<1x1x1xf32>
    %4 = vector.extract %3[0, 0, 0] : f32 from vector<1x1x1xf32>
    %5 = vector.broadcast %4 : f32 to vector<1x1024xf32>
    %cst_1 = arith.constant 4.8828125E-4 : f32
    %6 = vector.broadcast %cst_1 : f32 to vector<1x1024xf32>
    %7 = arith.mulf %5, %6 : vector<1x1024xf32>
    %8 = vector.broadcast %7 : vector<1x1024xf32> to vector<2x1024xf32>
    %9 = arith.subf %0, %8 : vector<2x1024xf32>
    %10 = arith.mulf %9, %9 : vector<2x1024xf32>
    %11 = vector.shape_cast %10 : vector<2x1024xf32> to vector<1x2x1024xf32>
    %cst_2 = arith.constant dense<0.000000e+00> : vector<1xf32>
    %12 = vector.multi_reduction <add>, %11, %cst_2 [1, 2] : vector<1x2x1024xf32> to vector<1xf32>
    %13 = vector.shape_cast %12 : vector<1xf32> to vector<1x1x1xf32>
    %14 = vector.extract %13[0, 0, 0] : f32 from vector<1x1x1xf32>
    %15 = vector.broadcast %14 : f32 to vector<1x1024xf32>
    %cst_3 = arith.constant 4.88519785E-4 : f32
    %16 = vector.broadcast %cst_3 : f32 to vector<1x1024xf32>
    %17 = arith.mulf %15, %16 : vector<1x1024xf32>
    %cst_4 = arith.constant 0.000000e+00 : f32
    %18 = vector.broadcast %cst_4 : f32 to vector<1x1024xf32>
    %19 = arith.maximumf %17, %18 : vector<1x1024xf32>
    %c0_5 = arith.constant 0 : index
    %c0_6 = arith.constant 0 : index
    %20 = memref.load %arg0[%c0_5, %c0_6] : memref<1x1xf32, #tpu.memory_space<smem>>
    %21 = math.rsqrt %19 : vector<1x1024xf32>
    %22 = vector.broadcast %20 : f32 to vector<1x1024xf32>
    %23 = arith.mulf %22, %21 : vector<1x1024xf32>
    %24 = vector.broadcast %23 : vector<1x1024xf32> to vector<2x1024xf32>
    %25 = arith.mulf %9, %24 : vector<2x1024xf32>
    %26 = math.absf %25 : vector<2x1024xf32>
    %cst_7 = arith.constant 0.000000e+00 : f32
    %27 = vector.broadcast %cst_7 : f32 to vector<2x1024xf32>
    %28 = arith.subf %27, %26 : vector<2x1024xf32>
    %29 = math.exp %28 : vector<2x1024xf32>
    %30 = arith.mulf %29, %29 : vector<2x1024xf32>
    %cst_8 = arith.constant 1.000000e+00 : f32
    %31 = vector.broadcast %cst_8 : f32 to vector<2x1024xf32>
    %32 = arith.addf %31, %29 : vector<2x1024xf32>
    %cst_9 = arith.constant 1.000000e+00 : f32
    %33 = vector.broadcast %cst_9 : f32 to vector<2x1024xf32>
    %34 = arith.addf %33, %30 : vector<2x1024xf32>
    %35 = arith.mulf %32, %34 : vector<2x1024xf32>
    %36 = tpu.reciprocal %35 {approx = true} : vector<2x1024xf32> -> vector<2x1024xf32>
    %37 = arith.mulf %35, %36 : vector<2x1024xf32>
    %cst_10 = arith.constant 2.000000e+00 : f32
    %38 = vector.broadcast %cst_10 : f32 to vector<2x1024xf32>
    %39 = arith.subf %38, %37 : vector<2x1024xf32>
    %40 = arith.mulf %36, %39 : vector<2x1024xf32>
    %cst_11 = arith.constant 0.000000e+00 : f32
    %41 = vector.broadcast %cst_11 : f32 to vector<2x1024xf32>
    %42 = arith.cmpf oge, %25, %41 : vector<2x1024xf32>
    %cst_12 = arith.constant 1.000000e+00 : f32
    %43 = vector.broadcast %cst_12 : f32 to vector<2x1024xf32>
    %44 = arith.select %42, %43, %29 : vector<2x1024xi1>, vector<2x1024xf32>
    %45 = arith.mulf %40, %34 : vector<2x1024xf32>
    %46 = arith.mulf %44, %45 : vector<2x1024xf32>
    %cst_13 = arith.constant 1.000000e+00 : f32
    %47 = vector.broadcast %cst_13 : f32 to vector<2x1024xf32>
    %48 = arith.subf %47, %30 : vector<2x1024xf32>
    %49 = arith.mulf %40, %32 : vector<2x1024xf32>
    %50 = arith.mulf %48, %49 : vector<2x1024xf32>
    %cst_14 = arith.constant 6.28318548 : f32
    %51 = vector.broadcast %cst_14 : f32 to vector<2x1024xf32>
    %52 = arith.mulf %46, %51 : vector<2x1024xf32>
    %cst_15 = arith.constant 3.14159274 : f32
    %53 = vector.broadcast %cst_15 : f32 to vector<2x1024xf32>
    %54 = arith.subf %52, %53 : vector<2x1024xf32>
    %cst_16 = arith.constant 2.71828175 : f32
    %55 = vector.broadcast %cst_16 : f32 to vector<2x1024xf32>
    %56 = arith.mulf %50, %55 : vector<2x1024xf32>
    %57 = math.cos %54 : vector<2x1024xf32>
    %58 = arith.mulf %56, %57 : vector<2x1024xf32>
    %59 = math.sin %54 : vector<2x1024xf32>
    %60 = arith.mulf %56, %59 : vector<2x1024xf32>
    %61 = math.exp %60 : vector<2x1024xf32>
    %62 = arith.mulf %25, %61 : vector<2x1024xf32>
    %63 = arith.addf %62, %58 : vector<2x1024xf32>
    %c0_17 = arith.constant 0 : index
    %c0_18 = arith.constant 0 : index
    %64 = vector.load %arg2[%c0_17, %c0_18] : memref<2x1024xf32, #tpu.memory_space<vmem>>, vector<2x1024xf32>
    tpu.vector_store %arg2[%c0_17, %c0_18], %63 {strides = array<i32>} : memref<2x1024xf32, #tpu.memory_space<vmem>>, vector<2x1024xf32>,
    return
  }
}

</mosaic_0001>

<llo_original>
// kernel: opt_aeg_v1.1
$region0: #{opt_aeg_v1.1}
  #allocation0 [shape = 'u32[]', space=smem, size = 0x4, offset = 0x4, fixed_abs, tag = 'smem constant byte address 0x4 - core index']
  #allocation1 [shape = 'u32[144,128]{1,0:T(1,128)}', space=vmem, size = 0x12000, scoped, tag = 'internal scratch']
  #allocation2 [shape = 'f32[1,1]{1,0:T(1,128)S(6)}', space=smem, size = 0x200, scoped, tag = 'scoped memory for opt_aeg_v1.1']
  %s0 = inlined_call_operand.<no memory space> [shape: f32[1,1], index: 0, kind: input, shape index: {}]
  %s1 = inlined_call_operand.vmem [shape: f32[2,1024], index: 1, kind: input, shape index: {}]
  %s2 = inlined_call_operand.vmem [shape: f32[2,1024], index: 2, kind: output, shape index: {}]
  %s3 = sld [smem:[#allocation0]]
  $region18: #{opt_aeg_v1.1} parent=0
    _
  %s5 = ssub.s32 1, %s3
  %s6 = scalar_select 0, %s5, %s3
  %7 = sst [smem:[#allocation2]] %s0
  // Predicated region
  $region2: #{opt_aeg_v1.1} parent=0 // pred_check
    _
  $region3: #{opt_aeg_v1.1} parent=0 // pred_check_branch
    %9 = sbr.rel (0) target = $region5
  $region4: #{opt_aeg_v1.1} parent=0 // pred_region
    _
  $region5: #{opt_aeg_v1.1} parent=0 // pred_fallthru
    _
  // Predicated region
  $region6: #{opt_aeg_v1.1} parent=0 // pred_check
    _
  $region7: #{opt_aeg_v1.1} parent=0 // pred_check_branch
    %11 = sbr.rel (0) target = $region9
  $region8: #{opt_aeg_v1.1} parent=0 // pred_region
    _
  $region9: #{opt_aeg_v1.1} parent=0 // pred_fallthru
    _
  %v12 = vld [vmem:[%s1] sm:$0xff]
  %v13 = vld [vmem:[%s1 + $0x8] sm:$0xff]
  %v16 = vcombine.high %v12, %v12
  %v18 = vunpack.c.l.s4 1983009808
  %v19 = vunpack.c.0.s8 %v18
  %v20 = vlaneseq
  %v21 = vshrl.u32 %v20, 7
  %v22 = vsub.s32 %v19, %v21
  %v23 = vrot.slane %v12, %v22
  %v25 = vunpack.c.l.s4 1983009808
  %v26 = vunpack.c.0.s8 %v25
  %v27 = vlaneseq
  %v28 = vshrl.u32 %v27, 7
  %v29 = vsub.s32 %v26, %v28
  %v30 = vrot.slane %v16, %v29
  %v31 = vcombine.high %v23, %v23
  %v32 = vcombine.high %v30, %v30
  %v33 = vcombine.high %v13, %v13
  %v35 = vunpack.c.l.s4 1983009808
  %v36 = vunpack.c.0.s8 %v35
  %v37 = vlaneseq
  %v38 = vshrl.u32 %v37, 7
  %v39 = vsub.s32 %v36, %v38
  %v40 = vrot.slane %v13, %v39
  %v42 = vunpack.c.l.s4 1983009808
  %v43 = vunpack.c.0.s8 %v42
  %v44 = vlaneseq
  %v45 = vshrl.u32 %v44, 7
  %v46 = vsub.s32 %v43, %v45
  %v47 = vrot.slane %v33, %v46
  %v48 = vcombine.high %v40, %v40
  %v49 = vcombine.high %v47, %v47
  %vm58 = vcmask 1041408
  %v59 = vsel %vm58, %v23, 0.0
  %v60 = vsel %vm58, %v31, 0.0
  %v61 = vadd.f32 %v59, %v60
  %v62 = vsel %vm58, %v30, 0.0
  %v63 = vadd.f32 %v61, %v62
  %v64 = vsel %vm58, %v32, 0.0
  %v65 = vadd.f32 %v63, %v64
  %v66 = vsel %vm58, %v40, 0.0
  %v67 = vadd.f32 %v65, %v66
  %v68 = vsel %vm58, %v48, 0.0
  %v69 = vadd.f32 %v67, %v68
  %v70 = vsel %vm58, %v47, 0.0
  %v71 = vadd.f32 %v69, %v70
  %v72 = vsel %vm58, %v49, 0.0
  %v73 = vadd.f32 %v71, %v72
  %74 = vadd.xlane.f32.xlu0 %v73
  %v75 = vpop.xlane.xlu0 %74
  %v76 = vrot.slane %v75, 4
  %v77 = vadd.f32 %v75, %v76
  %v78 = vrot.slane %v77, 2
  %v79 = vadd.f32 %v77, %v78
  %v80 = vrot.slane %v79, 1
  %v81 = vadd.f32 %v79, %v80
  %s82 = vtos %v81
  %v83 = vstv %s82
  %v84 = vmul.f32 %v83, 0.00048828125
  %v85 = vsub.f32 %v12, %v84
  %v86 = vsub.f32 %v13, %v84
  %v87 = vmul.f32 %v85, %v85
  %v88 = vmul.f32 %v86, %v86
  %v91 = vcombine.high %v87, %v87
  %v93 = vunpack.c.l.s4 1983009808
  %v94 = vunpack.c.0.s8 %v93
  %v95 = vlaneseq
  %v96 = vshrl.u32 %v95, 7
  %v97 = vsub.s32 %v94, %v96
  %v98 = vrot.slane %v87, %v97
  %v100 = vunpack.c.l.s4 1983009808
  %v101 = vunpack.c.0.s8 %v100
  %v102 = vlaneseq
  %v103 = vshrl.u32 %v102, 7
  %v104 = vsub.s32 %v101, %v103
  %v105 = vrot.slane %v91, %v104
  %v106 = vcombine.high %v98, %v98
  %v107 = vcombine.high %v105, %v105
  %v108 = vcombine.high %v88, %v88
  %v110 = vunpack.c.l.s4 1983009808
  %v111 = vunpack.c.0.s8 %v110
  %v112 = vlaneseq
  %v113 = vshrl.u32 %v112, 7
  %v114 = vsub.s32 %v111, %v113
  %v115 = vrot.slane %v88, %v114
  %v117 = vunpack.c.l.s4 1983009808
  %v118 = vunpack.c.0.s8 %v117
  %v119 = vlaneseq
  %v120 = vshrl.u32 %v119, 7
  %v121 = vsub.s32 %v118, %v120
  %v122 = vrot.slane %v108, %v121
  %v123 = vcombine.high %v115, %v115
  %v124 = vcombine.high %v122, %v122
  %v133 = vsel %vm58, %v98, 0.0
  %v134 = vsel %vm58, %v106, 0.0
  %v135 = vadd.f32 %v133, %v134
  %v136 = vsel %vm58, %v105, 0.0
  %v137 = vadd.f32 %v135, %v136
  %v138 = vsel %vm58, %v107, 0.0
  %v139 = vadd.f32 %v137, %v138
  %v140 = vsel %vm58, %v115, 0.0
  %v141 = vadd.f32 %v139, %v140
  %v142 = vsel %vm58, %v123, 0.0
  %v143 = vadd.f32 %v141, %v142
  %v144 = vsel %vm58, %v122, 0.0
  %v145 = vadd.f32 %v143, %v144
  %v146 = vsel %vm58, %v124, 0.0
  %v147 = vadd.f32 %v145, %v146
  %148 = vadd.xlane.f32.xlu0 %v147
  %v149 = vpop.xlane.xlu0 %148
  %v150 = vrot.slane %v149, 4
  %v151 = vadd.f32 %v149, %v150
  %v152 = vrot.slane %v151, 2
  %v153 = vadd.f32 %v151, %v152
  %v154 = vrot.slane %v153, 1
  %v155 = vadd.f32 %v153, %v154
  %s156 = vtos %v155
  %v157 = vstv %s156
  %v158 = vmul.f32 %v157, 0.0004885198
  %v159 = vmax.f32 %v158, 0.0
  %s160 = sld [smem:[#allocation2]]
  %v161 = vrsqrt.pop %v159
  %v162 = vstv %s160
  %v163 = vmul.f32 %v162, %v161
  %v164 = vmul.f32 %v85, %v163
  %v165 = vmul.f32 %v86, %v163
  %v166 = vand.u32 2147483647, %v164
  %v167 = vand.u32 2147483647, %v165
  %v168 = vsub.f32 0.0, %v166
  %v169 = vsub.f32 0.0, %v167
  %v170 = vmul.f32 %v168, 1.442695
  %v171 = vpow.pop %v170
  %v172 = vmul.f32 %v169, 1.442695
  %v173 = vpow.pop %v172
  %v174 = vmul.f32 %v171, %v171
  %v175 = vmul.f32 %v173, %v173
  %v176 = vadd.f32 %v171, 1.0
  %v177 = vadd.f32 %v173, 1.0
  %v178 = vadd.f32 %v174, 1.0
  %v179 = vadd.f32 %v175, 1.0
  %v180 = vmul.f32 %v176, %v178
  %v181 = vmul.f32 %v177, %v179
  %v182 = vrcp.pop %v180
  %v183 = vrcp.pop %v181
  %v184 = vmul.f32 %v180, %v182
  %v185 = vmul.f32 %v181, %v183
  %v186 = vsub.f32 2.0, %v184
  %v187 = vsub.f32 2.0, %v185
  %v188 = vmul.f32 %v182, %v186
  %v189 = vmul.f32 %v183, %v187
  %vm190 = vcmp.ge.f32.partialorder %v164, 0.0
  %vm191 = vcmp.ge.f32.partialorder %v165, 0.0
  %v192 = vsel %vm190, 1.0, %v171
  %v193 = vsel %vm191, 1.0, %v173
  %v194 = vmul.f32 %v188, %v178
  %v195 = vmul.f32 %v189, %v179
  %v196 = vmul.f32 %v192, %v194
  %v197 = vmul.f32 %v193, %v195
  %v198 = vsub.f32 1.0, %v174
  %v199 = vsub.f32 1.0, %v175
  %v200 = vmul.f32 %v188, %v176
  %v201 = vmul.f32 %v189, %v177
  %v202 = vmul.f32 %v198, %v200
  %v203 = vmul.f32 %v199, %v201
  %v204 = vmul.f32 %v196, 6.2831855
  %v205 = vmul.f32 %v197, 6.2831855
  %v206 = vsub.f32 %v204, 3.1415927
  %v207 = vsub.f32 %v205, 3.1415927
  %v208 = vmul.f32 %v202, 2.7182817
  %v209 = vmul.f32 %v203, 2.7182817
  %v210 = vand.u32 2147483647, %v206
  %vm211 = vcmp.le.f32.partialorder %v210, 0.7853982
  %vm212 = vcmp.lt.s32.totalorder %v206, 0
  %v213 = vand.u32 %v206, 2139095040
  %v214 = vshrl.u32 %v213, 23
  %v215 = vsub.s32 %v214, 127
  %v216 = vand.u32 2147483647, %v206
  %v217 = vand.u32 %v216, 8388607
  %v218 = vor.u32 %v217, 8388608
  %v219 = vsub.s32 0, %v218
  %v220 = vadd.s32 %v215, 1
  %vm221 = vcmp.gt.s32.totalorder %v220, 0
  %v222 = vsel %vm221, %v220, 0
  %v223 = vshrl.u32 %v222, 5
  %v224 = vand.u32 %v222, 31
  %v225 = vsub.s32 32, %v224
  %v226 = vshrl.u32 683565275, %v225
  %v227 = vshll.u32 683565275, %v224
  %v228 = vshrl.u32 2475754826, %v225
  %v229 = vor.u32 %v227, %v228
  %v230 = vshll.u32 2475754826, %v224
  %v231 = vshrl.u32 2131351028, %v225
  %v232 = vor.u32 %v230, %v231
  %v233 = vshll.u32 2131351028, %v224
  %v234 = vshrl.u32 2102212464, %v225
  %v235 = vor.u32 %v233, %v234
  %v236 = vshll.u32 2102212464, %v224
  %v237 = vshrl.u32 920167782, %v225
  %v238 = vor.u32 %v236, %v237
  %v239 = vshll.u32 920167782, %v224
  %v240 = vshrl.u32 1326507024, %v225
  %v241 = vor.u32 %v239, %v240
  %vm242 = vcmp.lt.s32.totalorder %v223, 1
  %vm243 = vcmp.lt.s32.totalorder %v223, 2
  %vm244 = vcmp.lt.s32.totalorder %v223, 3
  %vm245 = vcmp.lt.s32.totalorder %v223, 4
  %v246 = vsel %vm242, %v226, %v229
  %v247 = vsel %vm245, %v235, 2102212464
  %v248 = vsel %vm244, %v232, %v247
  %v249 = vsel %vm243, %v246, %v248
  %v250 = vsel %vm242, %v229, %v232
  %v251 = vsel %vm245, %v238, 920167782
  %v252 = vsel %vm244, %v235, %v251
  %v253 = vsel %vm243, %v250, %v252
  %v254 = vsel %vm242, %v232, %v235
  %v255 = vsel %vm245, %v241, 1326507024
  %v256 = vsel %vm244, %v238, %v255
  %v257 = vsel %vm243, %v254, %v256
  %v258 = vshll.u32 %v218, 8
  %v259 = vmul.u32.u64.compose %v258, %v257
  %v260 = vextract.low.u32 %v259
  %v261 = vextract.high.u32 %v259
  %v262 = vmul.u32.u64.compose %v258, %v253
  %v263 = vextract.low.u32 %v262
  %v264 = vextract.high.u32 %v262
  %v265 = vmul.u32 %v258, %v249
  %v266 = vadd.s32 %v261, %v263
  %vm267 = vc.u32 %v261, %v263
  %v268 = vadd.s32 %v264, 1
  %v269 = vsel %vm267, %v268, %v264
  %v270 = vadd.s32 %v265, %v269
  %v271 = vadd.s32 %v270, 536870912
  %v272 = vshrl.u32 %v271, 30
  %v273 = vshll.u32 %v272, 30
  %v274 = vsub.s32 %v270, %v273
  %vm275 = vcmp.lt.s32.totalorder %v274, 0
  %v276 = vsub.s32 0, %v274
  %v277 = vsel %vm275, %v276, %v274
  %v278 = vclz %v277
  %v279 = vsub.s32 %v278, 2
  %vm280 = vcmp.gt.s32.totalorder 0, %v279
  %v281 = vsel %vm280, 0, %v279
  %v282 = vsub.s32 32, %v281
  %v283 = vshll.u32 %v274, %v281
  %v284 = vshrl.u32 %v266, %v282
  %v285 = vor.u32 %v283, %v284
  %v286 = vsub.s32 4294967266, %v281
  %v287 = vadd.s32 %v286, 127
  %v288 = vshll.u32 %v287, 23
  %v289 = vor.u32 4788187, %v288
  %v290 = vand.u32 2147483647, %v289
  %v292 = vcvt.s32.f32 %v285
  %v293 = vmul.f32 %v292, %v290
  %v294 = vxor.u32 %v293, 2147483648
  %v295 = vsel %vm212, %v294, %v293
  %v296 = vsub.s32 4, %v272
  %v297 = vsel %vm212, %v296, %v272
  %v298 = vsel %vm211, %v206, %v295
  %v299 = vsel %vm211, 0, %v297
  %v300 = vcosq.f32.pop %v298
  %v301 = vsinq.f32.pop %v298
  %vm302 = vweird.f32 %v206
  %v303 = vand.u32 %v299, 3
  %vm304 = vcmp.lt.s32.totalorder %v303, 2
  %vm305 = vcmp.eq.s32.totalorder %v303, 0
  %v306 = vxor.u32 %v301, 2147483648
  %v307 = vsel %vm305, %v300, %v306
  %vm308 = vcmp.eq.s32.totalorder %v303, 2
  %v309 = vxor.u32 %v300, 2147483648
  %v310 = vsel %vm308, %v309, %v301
  %v311 = vsel %vm304, %v307, %v310
  %v312 = vsel %vm302, nan, %v311
  %v313 = vand.u32 2147483647, %v207
  %vm314 = vcmp.le.f32.partialorder %v313, 0.7853982
  %vm315 = vcmp.lt.s32.totalorder %v207, 0
  %v316 = vand.u32 %v207, 2139095040
  %v317 = vshrl.u32 %v316, 23
  %v318 = vsub.s32 %v317, 127
  %v319 = vand.u32 2147483647, %v207
  %v320 = vand.u32 %v319, 8388607
  %v321 = vor.u32 %v320, 8388608
  %v322 = vsub.s32 0, %v321
  %v323 = vadd.s32 %v318, 1
  %vm324 = vcmp.gt.s32.totalorder %v323, 0
  %v325 = vsel %vm324, %v323, 0
  %v326 = vshrl.u32 %v325, 5
  %v327 = vand.u32 %v325, 31
  %v328 = vsub.s32 32, %v327
  %v329 = vshrl.u32 683565275, %v328
  %v330 = vshll.u32 683565275, %v327
  %v331 = vshrl.u32 2475754826, %v328
  %v332 = vor.u32 %v330, %v331
  %v333 = vshll.u32 2475754826, %v327
  %v334 = vshrl.u32 2131351028, %v328
  %v335 = vor.u32 %v333, %v334
  %v336 = vshll.u32 2131351028, %v327
  %v337 = vshrl.u32 2102212464, %v328
  %v338 = vor.u32 %v336, %v337
  %v339 = vshll.u32 2102212464, %v327
  %v340 = vshrl.u32 920167782, %v328
  %v341 = vor.u32 %v339, %v340
  %v342 = vshll.u32 920167782, %v327
  %v343 = vshrl.u32 1326507024, %v328
  %v344 = vor.u32 %v342, %v343
  %vm345 = vcmp.lt.s32.totalorder %v326, 1
  %vm346 = vcmp.lt.s32.totalorder %v326, 2
  %vm347 = vcmp.lt.s32.totalorder %v326, 3
  %vm348 = vcmp.lt.s32.totalorder %v326, 4
  %v349 = vsel %vm345, %v329, %v332
  %v350 = vsel %vm348, %v338, 2102212464
  %v351 = vsel %vm347, %v335, %v350
  %v352 = vsel %vm346, %v349, %v351
  %v353 = vsel %vm345, %v332, %v335
  %v354 = vsel %vm348, %v341, 920167782
  %v355 = vsel %vm347, %v338, %v354
  %v356 = vsel %vm346, %v353, %v355
  %v357 = vsel %vm345, %v335, %v338
  %v358 = vsel %vm348, %v344, 1326507024
  %v359 = vsel %vm347, %v341, %v358
  %v360 = vsel %vm346, %v357, %v359
  %v361 = vshll.u32 %v321, 8
  %v362 = vmul.u32.u64.compose %v361, %v360
  %v363 = vextract.low.u32 %v362
  %v364 = vextract.high.u32 %v362
  %v365 = vmul.u32.u64.compose %v361, %v356
  %v366 = vextract.low.u32 %v365
  %v367 = vextract.high.u32 %v365
  %v368 = vmul.u32 %v361, %v352
  %v369 = vadd.s32 %v364, %v366
  %vm370 = vc.u32 %v364, %v366
  %v371 = vadd.s32 %v367, 1
  %v372 = vsel %vm370, %v371, %v367
  %v373 = vadd.s32 %v368, %v372
  %v374 = vadd.s32 %v373, 536870912
  %v375 = vshrl.u32 %v374, 30
  %v376 = vshll.u32 %v375, 30
  %v377 = vsub.s32 %v373, %v376
  %vm378 = vcmp.lt.s32.totalorder %v377, 0
  %v379 = vsub.s32 0, %v377
  %v380 = vsel %vm378, %v379, %v377
  %v381 = vclz %v380
  %v382 = vsub.s32 %v381, 2
  %vm383 = vcmp.gt.s32.totalorder 0, %v382
  %v384 = vsel %vm383, 0, %v382
  %v385 = vsub.s32 32, %v384
  %v386 = vshll.u32 %v377, %v384
  %v387 = vshrl.u32 %v369, %v385
  %v388 = vor.u32 %v386, %v387
  %v389 = vsub.s32 4294967266, %v384
  %v390 = vadd.s32 %v389, 127
  %v391 = vshll.u32 %v390, 23
  %v392 = vor.u32 4788187, %v391
  %v393 = vand.u32 2147483647, %v392
  %v395 = vcvt.s32.f32 %v388
  %v396 = vmul.f32 %v395, %v393
  %v397 = vxor.u32 %v396, 2147483648
  %v398 = vsel %vm315, %v397, %v396
  %v399 = vsub.s32 4, %v375
  %v400 = vsel %vm315, %v399, %v375
  %v401 = vsel %vm314, %v207, %v398
  %v402 = vsel %vm314, 0, %v400
  %v403 = vcosq.f32.pop %v401
  %v404 = vsinq.f32.pop %v401
  %vm405 = vweird.f32 %v207
  %v406 = vand.u32 %v402, 3
  %vm407 = vcmp.lt.s32.totalorder %v406, 2
  %vm408 = vcmp.eq.s32.totalorder %v406, 0
  %v409 = vxor.u32 %v404, 2147483648
  %v410 = vsel %vm408, %v403, %v409
  %vm411 = vcmp.eq.s32.totalorder %v406, 2
  %v412 = vxor.u32 %v403, 2147483648
  %v413 = vsel %vm411, %v412, %v404
  %v414 = vsel %vm407, %v410, %v413
  %v415 = vsel %vm405, nan, %v414
  %v416 = vmul.f32 %v208, %v312
  %v417 = vmul.f32 %v209, %v415
  %v418 = vand.u32 2147483647, %v206
  %vm419 = vcmp.le.f32.partialorder %v418, 0.7853982
  %vm420 = vcmp.lt.s32.totalorder %v206, 0
  %v421 = vand.u32 %v206, 2139095040
  %v422 = vshrl.u32 %v421, 23
  %v423 = vsub.s32 %v422, 127
  %v424 = vand.u32 2147483647, %v206
  %v425 = vand.u32 %v424, 8388607
  %v426 = vor.u32 %v425, 8388608
  %v427 = vsub.s32 0, %v426
  %v428 = vadd.s32 %v423, 1
  %vm429 = vcmp.gt.s32.totalorder %v428, 0
  %v430 = vsel %vm429, %v428, 0
  %v431 = vshrl.u32 %v430, 5
  %v432 = vand.u32 %v430, 31
  %v433 = vsub.s32 32, %v432
  %v434 = vshrl.u32 683565275, %v433
  %v435 = vshll.u32 683565275, %v432
  %v436 = vshrl.u32 2475754826, %v433
  %v437 = vor.u32 %v435, %v436
  %v438 = vshll.u32 2475754826, %v432
  %v439 = vshrl.u32 2131351028, %v433
  %v440 = vor.u32 %v438, %v439
  %v441 = vshll.u32 2131351028, %v432
  %v442 = vshrl.u32 2102212464, %v433
  %v443 = vor.u32 %v441, %v442
  %v444 = vshll.u32 2102212464, %v432
  %v445 = vshrl.u32 920167782, %v433
  %v446 = vor.u32 %v444, %v445
  %v447 = vshll.u32 920167782, %v432
  %v448 = vshrl.u32 1326507024, %v433
  %v449 = vor.u32 %v447, %v448
  %vm450 = vcmp.lt.s32.totalorder %v431, 1
  %vm451 = vcmp.lt.s32.totalorder %v431, 2
  %vm452 = vcmp.lt.s32.totalorder %v431, 3
  %vm453 = vcmp.lt.s32.totalorder %v431, 4
  %v454 = vsel %vm450, %v434, %v437
  %v455 = vsel %vm453, %v443, 2102212464
  %v456 = vsel %vm452, %v440, %v455
  %v457 = vsel %vm451, %v454, %v456
  %v458 = vsel %vm450, %v437, %v440
  %v459 = vsel %vm453, %v446, 920167782
  %v460 = vsel %vm452, %v443, %v459
  %v461 = vsel %vm451, %v458, %v460
  %v462 = vsel %vm450, %v440, %v443
  %v463 = vsel %vm453, %v449, 1326507024
  %v464 = vsel %vm452, %v446, %v463
  %v465 = vsel %vm451, %v462, %v464
  %v466 = vshll.u32 %v426, 8
  %v467 = vmul.u32.u64.compose %v466, %v465
  %v468 = vextract.low.u32 %v467
  %v469 = vextract.high.u32 %v467
  %v470 = vmul.u32.u64.compose %v466, %v461
  %v471 = vextract.low.u32 %v470
  %v472 = vextract.high.u32 %v470
  %v473 = vmul.u32 %v466, %v457
  %v474 = vadd.s32 %v469, %v471
  %vm475 = vc.u32 %v469, %v471
  %v476 = vadd.s32 %v472, 1
  %v477 = vsel %vm475, %v476, %v472
  %v478 = vadd.s32 %v473, %v477
  %v479 = vadd.s32 %v478, 536870912
  %v480 = vshrl.u32 %v479, 30
  %v481 = vshll.u32 %v480, 30
  %v482 = vsub.s32 %v478, %v481
  %vm483 = vcmp.lt.s32.totalorder %v482, 0
  %v484 = vsub.s32 0, %v482
  %v485 = vsel %vm483, %v484, %v482
  %v486 = vclz %v485
  %v487 = vsub.s32 %v486, 2
  %vm488 = vcmp.gt.s32.totalorder 0, %v487
  %v489 = vsel %vm488, 0, %v487
  %v490 = vsub.s32 32, %v489
  %v491 = vshll.u32 %v482, %v489
  %v492 = vshrl.u32 %v474, %v490
  %v493 = vor.u32 %v491, %v492
  %v494 = vsub.s32 4294967266, %v489
  %v495 = vadd.s32 %v494, 127
  %v496 = vshll.u32 %v495, 23
  %v497 = vor.u32 4788187, %v496
  %v498 = vand.u32 2147483647, %v497
  %v500 = vcvt.s32.f32 %v493
  %v501 = vmul.f32 %v500, %v498
  %v502 = vxor.u32 %v501, 2147483648
  %v503 = vsel %vm420, %v502, %v501
  %v504 = vsub.s32 4, %v480
  %v505 = vsel %vm420, %v504, %v480
  %v506 = vsel %vm419, %v206, %v503
  %v507 = vsel %vm419, 0, %v505
  %v508 = vcosq.f32.pop %v506
  %v509 = vsinq.f32.pop %v506
  %vm510 = vweird.f32 %v206
  %v511 = vadd.s32 %v507, 3
  %v512 = vand.u32 %v511, 3
  %vm513 = vcmp.lt.s32.totalorder %v512, 2
  %vm514 = vcmp.eq.s32.totalorder %v512, 0
  %v515 = vxor.u32 %v509, 2147483648
  %v516 = vsel %vm514, %v508, %v515
  %vm517 = vcmp.eq.s32.totalorder %v512, 2
  %v518 = vxor.u32 %v508, 2147483648
  %v519 = vsel %vm517, %v518, %v509
  %v520 = vsel %vm513, %v516, %v519
  %v521 = vsel %vm510, nan, %v520
  %v522 = vand.u32 2147483647, %v207
  %vm523 = vcmp.le.f32.partialorder %v522, 0.7853982
  %vm524 = vcmp.lt.s32.totalorder %v207, 0
  %v525 = vand.u32 %v207, 2139095040
  %v526 = vshrl.u32 %v525, 23
  %v527 = vsub.s32 %v526, 127
  %v528 = vand.u32 2147483647, %v207
  %v529 = vand.u32 %v528, 8388607
  %v530 = vor.u32 %v529, 8388608
  %v531 = vsub.s32 0, %v530
  %v532 = vadd.s32 %v527, 1
  %vm533 = vcmp.gt.s32.totalorder %v532, 0
  %v534 = vsel %vm533, %v532, 0
  %v535 = vshrl.u32 %v534, 5
  %v536 = vand.u32 %v534, 31
  %v537 = vsub.s32 32, %v536
  %v538 = vshrl.u32 683565275, %v537
  %v539 = vshll.u32 683565275, %v536
  %v540 = vshrl.u32 2475754826, %v537
  %v541 = vor.u32 %v539, %v540
  %v542 = vshll.u32 2475754826, %v536
  %v543 = vshrl.u32 2131351028, %v537
  %v544 = vor.u32 %v542, %v543
  %v545 = vshll.u32 2131351028, %v536
  %v546 = vshrl.u32 2102212464, %v537
  %v547 = vor.u32 %v545, %v546
  %v548 = vshll.u32 2102212464, %v536
  %v549 = vshrl.u32 920167782, %v537
  %v550 = vor.u32 %v548, %v549
  %v551 = vshll.u32 920167782, %v536
  %v552 = vshrl.u32 1326507024, %v537
  %v553 = vor.u32 %v551, %v552
  %vm554 = vcmp.lt.s32.totalorder %v535, 1
  %vm555 = vcmp.lt.s32.totalorder %v535, 2
  %vm556 = vcmp.lt.s32.totalorder %v535, 3
  %vm557 = vcmp.lt.s32.totalorder %v535, 4
  %v558 = vsel %vm554, %v538, %v541
  %v559 = vsel %vm557, %v547, 2102212464
  %v560 = vsel %vm556, %v544, %v559
  %v561 = vsel %vm555, %v558, %v560
  %v562 = vsel %vm554, %v541, %v544
  %v563 = vsel %vm557, %v550, 920167782
  %v564 = vsel %vm556, %v547, %v563
  %v565 = vsel %vm555, %v562, %v564
  %v566 = vsel %vm554, %v544, %v547
  %v567 = vsel %vm557, %v553, 1326507024
  %v568 = vsel %vm556, %v550, %v567
  %v569 = vsel %vm555, %v566, %v568
  %v570 = vshll.u32 %v530, 8
  %v571 = vmul.u32.u64.compose %v570, %v569
  %v572 = vextract.low.u32 %v571
  %v573 = vextract.high.u32 %v571
  %v574 = vmul.u32.u64.compose %v570, %v565
  %v575 = vextract.low.u32 %v574
  %v576 = vextract.high.u32 %v574
  %v577 = vmul.u32 %v570, %v561
  %v578 = vadd.s32 %v573, %v575
  %vm579 = vc.u32 %v573, %v575
  %v580 = vadd.s32 %v576, 1
  %v581 = vsel %vm579, %v580, %v576
  %v582 = vadd.s32 %v577, %v581
  %v583 = vadd.s32 %v582, 536870912
  %v584 = vshrl.u32 %v583, 30
  %v585 = vshll.u32 %v584, 30
  %v586 = vsub.s32 %v582, %v585
  %vm587 = vcmp.lt.s32.totalorder %v586, 0
  %v588 = vsub.s32 0, %v586
  %v589 = vsel %vm587, %v588, %v586
  %v590 = vclz %v589
  %v591 = vsub.s32 %v590, 2
  %vm592 = vcmp.gt.s32.totalorder 0, %v591
  %v593 = vsel %vm592, 0, %v591
  %v594 = vsub.s32 32, %v593
  %v595 = vshll.u32 %v586, %v593
  %v596 = vshrl.u32 %v578, %v594
  %v597 = vor.u32 %v595, %v596
  %v598 = vsub.s32 4294967266, %v593
  %v599 = vadd.s32 %v598, 127
  %v600 = vshll.u32 %v599, 23
  %v601 = vor.u32 4788187, %v600
  %v602 = vand.u32 2147483647, %v601
  %v604 = vcvt.s32.f32 %v597
  %v605 = vmul.f32 %v604, %v602
  %v606 = vxor.u32 %v605, 2147483648
  %v607 = vsel %vm524, %v606, %v605
  %v608 = vsub.s32 4, %v584
  %v609 = vsel %vm524, %v608, %v584
  %v610 = vsel %vm523, %v207, %v607
  %v611 = vsel %vm523, 0, %v609
  %v612 = vcosq.f32.pop %v610
  %v613 = vsinq.f32.pop %v610
  %vm614 = vweird.f32 %v207
  %v615 = vadd.s32 %v611, 3
  %v616 = vand.u32 %v615, 3
  %vm617 = vcmp.lt.s32.totalorder %v616, 2
  %vm618 = vcmp.eq.s32.totalorder %v616, 0
  %v619 = vxor.u32 %v613, 2147483648
  %v620 = vsel %vm618, %v612, %v619
  %vm621 = vcmp.eq.s32.totalorder %v616, 2
  %v622 = vxor.u32 %v612, 2147483648
  %v623 = vsel %vm621, %v622, %v613
  %v624 = vsel %vm617, %v620, %v623
  %v625 = vsel %vm614, nan, %v624
  %v626 = vmul.f32 %v208, %v521
  %v627 = vmul.f32 %v209, %v625
  %v628 = vmul.f32 %v626, 1.442695
  %v629 = vpow.pop %v628
  %v630 = vmul.f32 %v627, 1.442695
  %v631 = vpow.pop %v630
  %v632 = vmul.f32 %v164, %v629
  %v633 = vmul.f32 %v165, %v631
  %v634 = vadd.f32 %v632, %v416
  %v635 = vadd.f32 %v633, %v417
  %636 = vst [vmem:[%s2] sm:$0xff] %v634
  %637 = vst [vmem:[%s2 + $0x8] sm:$0xff] %v635
  // Predicated region
  $region10: #{opt_aeg_v1.1} parent=0 // pred_check
    _
  $region11: #{opt_aeg_v1.1} parent=0 // pred_check_branch
    %639 = sbr.rel (0) target = $region13
  $region12: #{opt_aeg_v1.1} parent=0 // pred_region
    _
  $region13: #{opt_aeg_v1.1} parent=0 // pred_fallthru
    _
  // Predicated region
  $region14: #{opt_aeg_v1.1} parent=0 // pred_check
    _
  $region15: #{opt_aeg_v1.1} parent=0 // pred_check_branch
    %641 = sbr.rel (0) target = $region17
  $region16: #{opt_aeg_v1.1} parent=0 // pred_region
    _
  $region17: #{opt_aeg_v1.1} parent=0 // pred_fallthru
    _

</llo_original>
